<compile_context>
chip_gen: v7x
topology: tpu7x:2x2x1
jax: 0.10.0
libtpu: 0.0.40
codegen_flags: <defaults>
</compile_context>

<pallas_src>
import jax
import jax.numpy as jnp
from jax.experimental import pallas as pl
from jax.experimental.pallas import tpu as pltpu


def _cluster_assign_kernel(x_ref, c_ref, c2_ref, o_ref):
    # x_ref:  (TILE_N, D) bf16 tile of input points
    # c_ref:  (K, D)      bf16 cluster centers (resident across grid steps)
    # c2_ref: (K, 1)      f32  0.5 * ||c_k||^2
    # o_ref:  (1, TILE_N) int32 labels (lane-dense output row)
    #
    # argmin_k ||x - c_k||^2  ==  argmax_k ( x . c_k - 0.5 * ||c_k||^2 )
    s = jnp.einsum(
        "kd,nd->kn", c_ref[...], x_ref[...],
        preferred_element_type=jnp.float32,
    )                                                   # (K, TILE_N) on MXU
    score = s - c2_ref[...]                             # f32, lane broadcast

    k = score.shape[0]
    best = jnp.max(score, axis=0, keepdims=True)        # (1, TILE_N)
    k_iota = jax.lax.broadcasted_iota(jnp.int32, score.shape, 0)
    # First-match tie-break (lowest k among maxima) == torch argmin semantics.
    label = jnp.min(jnp.where(score >= best, k_iota, k), axis=0, keepdims=True)

    o_ref[...] = label.astype(jnp.int32)


def cluster_predict(x, centers, *, tile_n=1024):
    """Predict nearest-cluster labels for each row of x.

    x:       (N, D) float points
    centers: (K, D) float cluster centers
    returns: (N,)   int32 labels
    """
    n, d = x.shape
    k, d2 = centers.shape
    assert d == d2
    assert tile_n % 128 == 0, "tile_n must be a multiple of 128 (lane width)"

    # Keep the (parallel) grid at >= 2 steps when possible so both v7x
    # TensorCores get work; v5e/v6e are unaffected.
    while tile_n > 128 and pl.cdiv(n, tile_n) < 2:
        tile_n //= 2

    num_tiles = pl.cdiv(n, tile_n)
    n_pad = num_tiles * tile_n

    # bf16 inputs: halve the dominant HBM read of X, native MXU rate.
    x_bf16 = x.astype(jnp.bfloat16)
    if n_pad != n:
        x_bf16 = jnp.pad(x_bf16, ((0, n_pad - n), (0, 0)))
    c_bf16 = centers.astype(jnp.bfloat16)

    # 0.5 * ||c||^2 of the bf16-rounded centers, kept in f32.
    c_f32 = c_bf16.astype(jnp.float32)
    c2_half = 0.5 * jnp.sum(c_f32 * c_f32, axis=-1, keepdims=True)  # (K, 1)

    out = pl.pallas_call(
        _cluster_assign_kernel,
        out_shape=jax.ShapeDtypeStruct((1, n_pad), jnp.int32),
        grid_spec=pl.GridSpec(
            grid=(num_tiles,),
            in_specs=[
                pl.BlockSpec((tile_n, d), lambda i: (i, 0)),  # X tile
                pl.BlockSpec((k, d), lambda i: (0, 0)),       # centers (resident)
                pl.BlockSpec((k, 1), lambda i: (0, 0)),       # 0.5*||c||^2
            ],
            out_specs=pl.BlockSpec((1, tile_n), lambda i: (0, i)),
        ),
        compiler_params=pltpu.CompilerParams(
            dimension_semantics=("parallel",)),
    )(x_bf16, c_bf16, c2_half)

    return out[0, :n]


if __name__ == "__main__":
    key = jax.random.PRNGKey(0)
    kx, kc = jax.random.split(key)

    # points, feature dim, number of clusters.  N is deliberately NOT a
    # multiple of the tile so the cdiv/padding path is exercised; the wrapper
    # shrinks tile_n 1024 -> 512 so the grid has 2 parallel steps.
    N, D, K = 1000, 32, 8

    # Deterministic synthetic "learned" cluster centers (stands in for the
    # CluStream micro-cluster state) and input points.
    centers = jax.random.normal(kc, (K, D), dtype=jnp.float32) * 3.0
    x = jax.random.normal(kx, (N, D), dtype=jnp.float32)

    labels = jax.block_until_ready(cluster_predict(x, centers))
    assert labels.shape == (N,) and labels.dtype == jnp.int32
    assert bool(jnp.all((labels >= 0) & (labels < K)))

    # Reference nearest-center assignment in full f32.
    d_ref = jnp.sum((x[:, None, :] - centers[None, :, :]) ** 2, axis=-1)  # (N, K)
    ref_labels = jnp.argmin(d_ref, axis=-1).astype(jnp.int32)

    # bf16 inputs can flip near-degenerate ties to another (still essentially
    # nearest) center, so assert semantic correctness with a tolerance:
    # the chosen center must be as close as the true nearest one (numerically),
    # and the vast majority of labels must match the exact f32 argmin.
    chosen_d = d_ref[jnp.arange(N), labels]
    min_d = jnp.min(d_ref, axis=-1)
    assert bool(jnp.all(chosen_d <= min_d * 1.01 + 1e-3))
    assert float(jnp.mean((labels == ref_labels).astype(jnp.float32))) > 0.95

    print("KERNEL_OK")
</pallas_src>

<mosaic_0001>
module attributes {stable_mosaic.version = 11 : i64} {
  func.func @_cluster_assign_kernel(%arg0: i32, %arg1: memref<512x32xbf16, #tpu.memory_space<vmem>>, %arg2: memref<8x32xbf16, #tpu.memory_space<vmem>>, %arg3: memref<8x1xf32, #tpu.memory_space<vmem>>, %arg4: memref<1x512xi32, #tpu.memory_space<vmem>>) attributes {dimension_semantics = [#tpu.dimension_semantics<parallel>], iteration_bounds = array<i64: 2>, scalar_prefetch = 0 : i64, scratch_operands = 0 : i64, tpu.core_type = #tpu.core_type<tc>, window_params = [{transform_indices = @transform_0, window_bounds = array<i64: 512, 32>}, {pipeline_mode = #tpu.pipeline_mode<synchronous>, transform_indices = @transform_1, window_bounds = array<i64: 8, 32>}, {pipeline_mode = #tpu.pipeline_mode<synchronous>, transform_indices = @transform_2, window_bounds = array<i64: 8, 1>}, {transform_indices = @transform_3, window_bounds = array<i64: 1, 512>}]} {
    %c0 = arith.constant 0 : index
    %c0_0 = arith.constant 0 : index
    %0 = vector.load %arg2[%c0, %c0_0] : memref<8x32xbf16, #tpu.memory_space<vmem>>, vector<8x32xbf16>
    %c0_1 = arith.constant 0 : index
    %c0_2 = arith.constant 0 : index
    %1 = vector.load %arg1[%c0_1, %c0_2] : memref<512x32xbf16, #tpu.memory_space<vmem>>, vector<512x32xbf16>
    "tpu.trace_start"() <{level = 10 : i32, message = "kd,nd->kn"}> : () -> ()
    %cst = arith.constant dense<0.000000e+00> : vector<8x512xf32>
    %2 = tpu.matmul %0, %1, %cst {dimension_numbers = #tpu.dot_dimension_numbers<[1], [1], [0], [0], [0, 0, 1, 0], [], []>} : vector<8x32xbf16>, vector<512x32xbf16>, vector<8x512xf32> -> vector<8x512xf32>
    "tpu.trace_stop"() : () -> ()
    %c0_3 = arith.constant 0 : index
    %c0_4 = arith.constant 0 : index
    %3 = vector.load %arg3[%c0_3, %c0_4] : memref<8x1xf32, #tpu.memory_space<vmem>>, vector<8x1xf32>
    %4 = vector.broadcast %3 : vector<8x1xf32> to vector<8x512xf32>
    %5 = arith.subf %2, %4 : vector<8x512xf32>
    %cst_5 = arith.constant dense<0xFF800000> : vector<512xf32>
    %6 = vector.multi_reduction <maximumf>, %5, %cst_5 [0] : vector<8x512xf32> to vector<512xf32>
    %7 = vector.shape_cast %6 : vector<512xf32> to vector<1x512xf32>
    %8 = tpu.iota {dimensions = array<i32: 0>} : vector<8x512xi32>
    %9 = vector.broadcast %7 : vector<1x512xf32> to vector<8x512xf32>
    %10 = arith.cmpf oge, %5, %9 : vector<8x512xf32>
    %c8_i32 = arith.constant 8 : i32
    %11 = vector.broadcast %c8_i32 : i32 to vector<8x512xi32>
    %12 = arith.select %10, %8, %11 : vector<8x512xi1>, vector<8x512xi32>
    %cst_6 = arith.constant dense<2147483647> : vector<512xi32>
    %13 = vector.multi_reduction <minsi>, %12, %cst_6 [0] : vector<8x512xi32> to vector<512xi32>
    %14 = vector.shape_cast %13 : vector<512xi32> to vector<1x512xi32>
    %c0_7 = arith.constant 0 : index
    %c0_8 = arith.constant 0 : index
    %15 = vector.load %arg4[%c0_7, %c0_8] : memref<1x512xi32, #tpu.memory_space<vmem>>, vector<1x512xi32>
    tpu.vector_store %arg4[%c0_7, %c0_8], %14 {strides = array<i32>} : memref<1x512xi32, #tpu.memory_space<vmem>>, vector<1x512xi32>,
    return
  }
  func.func @transform_0(%arg0: i32) -> (i32, i32) {
    %c0_i32 = arith.constant 0 : i32
    %c0_i32_0 = arith.constant 0 : i32
    return %arg0, %c0_i32 : i32, i32
  }
  func.func @transform_1(%arg0: i32) -> (i32, i32) {
    %c0_i32 = arith.constant 0 : i32
    %c0_i32_0 = arith.constant 0 : i32
    %c0_i32_1 = arith.constant 0 : i32
    return %c0_i32, %c0_i32_0 : i32, i32
  }
  func.func @transform_2(%arg0: i32) -> (i32, i32) {
    %c0_i32 = arith.constant 0 : i32
    %c0_i32_0 = arith.constant 0 : i32
    %c0_i32_1 = arith.constant 0 : i32
    return %c0_i32, %c0_i32_0 : i32, i32
  }
  func.func @transform_3(%arg0: i32) -> (i32, i32) {
    %c0_i32 = arith.constant 0 : i32
    %c0_i32_0 = arith.constant 0 : i32
    return %c0_i32, %arg0 : i32, i32
  }
}

</mosaic_0001>

<llo_original>
// kernel: tpu_custom_call.1
$region0: #{tpu_custom_call.1}
  #allocation0 [shape = 'u32[]', space=smem, size = 0x4, offset = 0x4, fixed_abs, tag = 'smem constant byte address 0x4 - core index']
  #allocation1 [shape = 'u32[144,128]{1,0:T(1,128)}', space=vmem, size = 0x12000, scoped, tag = 'internal scratch']
  %s0 = inlined_call_operand.vmem [shape: bf16[1024,32], index: 0, kind: input, shape index: {}]
  %s1 = inlined_call_operand.vmem [shape: bf16[8,32], index: 1, kind: input, shape index: {}]
  %s2 = inlined_call_operand.vmem [shape: f32[8,1], index: 2, kind: input, shape index: {}]
  %s3 = inlined_call_operand.hbm [shape: s32[1,1024], index: 3, kind: output, shape index: {}]
  %s4 = sld [smem:[#allocation0]]
  $region45: #{tpu_custom_call.1} parent=0
    _
  %s6 = ssub.s32 1, %s4
  %s7 = scalar_select 0, %s6, %s4
  $region1: #{tpu_custom_call.1} parent=0
    #allocation2 [shape = 'u8[4096]{0}', space=vmem, size = 0x1000, scoped, tag = 'output window, operand 0']
    #allocation3 [shape = 's32[2]{0}', space=sflag, size = 0x8, scoped, tag = 'scoped memory for tpu_custom_call.1']
    %8 = vsyncpa [#allocation3], 0
    %s9 = scalar_lea.sflag [#allocation3], 1
    %10 = vsyncpa %s9, 0
    loop: start=0, step=1, limit=4
    $region2: #{tpu_custom_call.1} parent=1 // loop_pre_header
      _
    $region3: #{tpu_custom_call.1} parent=1 // loop_header
      %s12 = sphi 0, %s16
      %p13 = scmp.ge.s32.totalorder %s12, 4
      %s22 = sphi 0, %s24
      %s25 = sphi 0, %s22
      %s26 = sphi 0, %s25
      %s42 = sphi 0, %s26
      %s46 = sphi 0, %s46
      %s48 = sphi 0, %s46
      %s49 = sphi 0, %s48
      %s63 = sphi 0, %s49
      %s67 = sphi 0, %s67
      %s69 = sphi 0, %s67
      %s70 = sphi 0, %s69
      %s84 = sphi 0, %s70
      %s90 = sphi 0, %s92
      %s93 = sphi 0, %s90
      %s94 = sphi 0, %s93
      %s110 = sphi 0, %s94
    $region4: #{tpu_custom_call.1} parent=1 // loop_header_branch
      %15 = sbr.rel (%p13) target = $region8
    $region5: #{tpu_custom_call.1} parent=1 // loop_body
      %s17 = ssub.s32 %s12, 1
      %s18 = ssub.s32 %s12, 2
      %s19 = sadd.s32 %s12, 1
      %s20 = ssub.s32 %s12, %s19
      %p21 = scmp.eq.s32.totalorder %s20, 0
      %s23 = sadd.s32 %s22, 1
      %s24 = scalar_select %p21, %s22, %s23
      %p27 = pneg %p21
      %p28 = scmp.eq.s32.totalorder %s12, 1
      %p29 = por %p27, %p28
      %p30 = scmp.ne.s32.totalorder %s22, %s25
      %p31 = scmp.eq.s32.totalorder %s12, 0
      %p32 = por %p30, %p31
      %p33 = scmp.ne.s32.totalorder %s22, %s25
      %p34 = scmp.eq.s32.totalorder %s17, 1
      %p35 = por %p33, %p34
      %p36 = scmp.ne.s32.totalorder %s25, %s26
      %p37 = scmp.eq.s32.totalorder %s17, 0
      %p38 = por %p36, %p37
      %p39 = scmp.ne.s32.totalorder %s25, %s26
      %p40 = scmp.eq.s32.totalorder %s18, 1
      %p41 = por %p39, %p40
      %p43 = scmp.ne.s32.totalorder %s26, %s42
      %p44 = scmp.eq.s32.totalorder %s18, 0
      %p45 = por %p43, %p44
      %s47 = sadd.s32 %s46, 1
      %p50 = scmp.eq.s32.totalorder %s12, 1
      %p51 = scmp.ne.s32.totalorder %s46, %s48
      %p52 = scmp.eq.s32.totalorder %s12, 0
      %p53 = por %p51, %p52
      %p54 = scmp.ne.s32.totalorder %s46, %s48
      %p55 = scmp.eq.s32.totalorder %s17, 1
      %p56 = por %p54, %p55
      %p57 = scmp.ne.s32.totalorder %s48, %s49
      %p58 = scmp.eq.s32.totalorder %s17, 0
      %p59 = por %p57, %p58
      %p60 = scmp.ne.s32.totalorder %s48, %s49
      %p61 = scmp.eq.s32.totalorder %s18, 1
      %p62 = por %p60, %p61
      %p64 = scmp.ne.s32.totalorder %s49, %s63
      %p65 = scmp.eq.s32.totalorder %s18, 0
      %p66 = por %p64, %p65
      %s68 = sadd.s32 %s67, 1
      %p71 = scmp.eq.s32.totalorder %s12, 1
      %p72 = scmp.ne.s32.totalorder %s67, %s69
      %p73 = scmp.eq.s32.totalorder %s12, 0
      %p74 = por %p72, %p73
      %p75 = scmp.ne.s32.totalorder %s67, %s69
      %p76 = scmp.eq.s32.totalorder %s17, 1
      %p77 = por %p75, %p76
      %p78 = scmp.ne.s32.totalorder %s69, %s70
      %p79 = scmp.eq.s32.totalorder %s17, 0
      %p80 = por %p78, %p79
      %p81 = scmp.ne.s32.totalorder %s69, %s70
      %p82 = scmp.eq.s32.totalorder %s18, 1
      %p83 = por %p81, %p82
      %p85 = scmp.ne.s32.totalorder %s70, %s84
      %p86 = scmp.eq.s32.totalorder %s18, 0
      %p87 = por %p85, %p86
      %s88 = ssub.s32 %s12, %s19
      %p89 = scmp.eq.s32.totalorder %s88, 0
      %s91 = sadd.s32 %s90, 1
      %s92 = scalar_select %p89, %s90, %s91
      %p95 = pneg %p89
      %p96 = scmp.eq.s32.totalorder %s12, 1
      %p97 = por %p95, %p96
      %p98 = scmp.ne.s32.totalorder %s90, %s93
      %p99 = scmp.eq.s32.totalorder %s12, 0
      %p100 = por %p98, %p99
      %p101 = scmp.ne.s32.totalorder %s90, %s93
      %p102 = scmp.eq.s32.totalorder %s17, 1
      %p103 = por %p101, %p102
      %p104 = scmp.ne.s32.totalorder %s93, %s94
      %p105 = scmp.eq.s32.totalorder %s17, 0
      %p106 = por %p104, %p105
      %p107 = scmp.ne.s32.totalorder %s93, %s94
      %p108 = scmp.eq.s32.totalorder %s18, 1
      %p109 = por %p107, %p108
      %p111 = scmp.ne.s32.totalorder %s94, %s110
      %p112 = scmp.eq.s32.totalorder %s18, 0
      %p113 = por %p111, %p112
      %p114 = scmp.le.s32.totalorder 1, %s12
      %p115 = scmp.lt.s32.totalorder %s12, 3
      %p116 = pnand %p114, %p115
      %p117 = pneg %p116
      // Predicated region
      $region9: #{tpu_custom_call.1} parent=5 // pred_check
        _
      $region10: #{tpu_custom_call.1} parent=5 // pred_check_branch
        %119 = sbr.rel (%p116) target = $region12
      $region11: #{tpu_custom_call.1} parent=5 // pred_region
        %s120 = ssub.s32 %s12, 1
        // Predicated region
        $region13: #{tpu_custom_call.1} parent=11 // pred_check
          %p121 = pneg %p59
        $region14: #{tpu_custom_call.1} parent=11 // pred_check_branch
          %123 = sbr.rel (%p121) target = $region16
        $region15: #{tpu_custom_call.1} parent=11 // pred_region
          _
        $region16: #{tpu_custom_call.1} parent=11 // pred_fallthru
          _
        // Predicated region
        $region17: #{tpu_custom_call.1} parent=11 // pred_check
          %p124 = pneg %p80
        $region18: #{tpu_custom_call.1} parent=11 // pred_check_branch
          %126 = sbr.rel (%p124) target = $region20
        $region19: #{tpu_custom_call.1} parent=11 // pred_region
          _
        $region20: #{tpu_custom_call.1} parent=11 // pred_fallthru
          _
      $region12: #{tpu_custom_call.1} parent=5 // pred_fallthru
        _
      %p127 = scmp.lt.s32.totalorder %s12, 2
      // Predicated region
      $region21: #{tpu_custom_call.1} parent=5 // pred_check
        %p128 = pneg %p127
      $region22: #{tpu_custom_call.1} parent=5 // pred_check_branch
        %130 = sbr.rel (%p128) target = $region24
      $region23: #{tpu_custom_call.1} parent=5 // pred_region
        // Predicated region
        $region25: #{tpu_custom_call.1} parent=23 // pred_check
          %p131 = pneg %p32
        $region26: #{tpu_custom_call.1} parent=23 // pred_check_branch
          %133 = sbr.rel (%p131) target = $region28
        $region27: #{tpu_custom_call.1} parent=23 // pred_region
          %s134 = smul.u32 64, %s12
          %p135 = scmp.lt.s32.totalorder %s134, 127
          %s136 = scalar_select %p135, %s134, 127
          %s137 = smul.addr %s136, 4
          %s138 = scalar_lea.vmem %s0, %s137
          %s139 = smul.u32 64, %s12
        $region28: #{tpu_custom_call.1} parent=23 // pred_fallthru
          _
      $region24: #{tpu_custom_call.1} parent=5 // pred_fallthru
        _
      %p140 = scmp.le.s32.totalorder 1, %s12
      %p141 = scmp.lt.s32.totalorder %s12, 3
      %p142 = pnand %p140, %p141
      %p143 = pneg %p142
      // Predicated region
      $region29: #{tpu_custom_call.1} parent=5 // pred_check
        _
      $region30: #{tpu_custom_call.1} parent=5 // pred_check_branch
        %145 = sbr.rel (%p142) target = $region32
      $region31: #{tpu_custom_call.1} parent=5 // pred_region
        %s146 = ssub.s32 %s12, 1
        %s147 = smul.u32 64, %s17
        %p148 = scmp.lt.s32.totalorder %s147, 127
        %s149 = scalar_select %p148, %s147, 127
        %s150 = smul.addr %s149, 4
        %s151 = scalar_lea.vmem %s0, %s150
        %p152 = pneg %p38
        %p153 = pneg %p35
        %p154 = pneg %p59
        %p155 = pneg %p56
        %p156 = pneg %p80
        %p157 = pneg %p77
        %p158 = pneg %p106
        %p159 = pneg %p103
        %s160 = sand.u32 %s93, 1
        %s161 = scalar_lea.sflag [#allocation3], %s160
        %s162 = sand.u32 %s93, 1
        %s163 = smul.addr %s162, 4
        %s164 = scalar_lea.vmem [#allocation2], %s163
        %s165 = smul.u32 64, %s17
        %p166 = scmp.lt.s32.totalorder %s165, 127
        %s167 = scalar_select %p166, %s165, 127
        %s168 = smul.addr %s167, 4
        %s169 = scalar_lea.vmem %s0, %s168
        %s170 = smul.u32 64, %s17
        %s171 = smul.u32 4, %s17
        %v173 = vld [vmem:[%s1] sm:$0xf]
        %v174 = vld [vmem:[%s169] sm:$0xf]
        %v175 = vld [vmem:[%s169 + $0x4] sm:$0xf]
        %v176 = vld [vmem:[%s169 + $0x8] sm:$0xf]
        %v177 = vld [vmem:[%s169 + $0xc] sm:$0xf]
        %v178 = vld [vmem:[%s169 + $0x10] sm:$0xf]
        %v179 = vld [vmem:[%s169 + $0x14] sm:$0xf]
        %v180 = vld [vmem:[%s169 + $0x18] sm:$0xf]
        %v181 = vld [vmem:[%s169 + $0x1c] sm:$0xf]
        %v182 = vld [vmem:[%s169 + $0x20] sm:$0xf]
        %v183 = vld [vmem:[%s169 + $0x24] sm:$0xf]
        %v184 = vld [vmem:[%s169 + $0x28] sm:$0xf]
        %v185 = vld [vmem:[%s169 + $0x2c] sm:$0xf]
        %v186 = vld [vmem:[%s169 + $0x30] sm:$0xf]
        %v187 = vld [vmem:[%s169 + $0x34] sm:$0xf]
        %v188 = vld [vmem:[%s169 + $0x38] sm:$0xf]
        %v189 = vld [vmem:[%s169 + $0x3c] sm:$0xf]
        %v190 = vld [vmem:[%s169 + $0x40] sm:$0xf]
        %v191 = vld [vmem:[%s169 + $0x44] sm:$0xf]
        %v192 = vld [vmem:[%s169 + $0x48] sm:$0xf]
        %v193 = vld [vmem:[%s169 + $0x4c] sm:$0xf]
        %v194 = vld [vmem:[%s169 + $0x50] sm:$0xf]
        %v195 = vld [vmem:[%s169 + $0x54] sm:$0xf]
        %v196 = vld [vmem:[%s169 + $0x58] sm:$0xf]
        %v197 = vld [vmem:[%s169 + $0x5c] sm:$0xf]
        %v198 = vld [vmem:[%s169 + $0x60] sm:$0xf]
        %v199 = vld [vmem:[%s169 + $0x64] sm:$0xf]
        %v200 = vld [vmem:[%s169 + $0x68] sm:$0xf]
        %v201 = vld [vmem:[%s169 + $0x6c] sm:$0xf]
        %v202 = vld [vmem:[%s169 + $0x70] sm:$0xf]
        %v203 = vld [vmem:[%s169 + $0x74] sm:$0xf]
        %v204 = vld [vmem:[%s169 + $0x78] sm:$0xf]
        %v205 = vld [vmem:[%s169 + $0x7c] sm:$0xf]
        %v206 = vld [vmem:[%s169 + $0x80] sm:$0xf]
        %v207 = vld [vmem:[%s169 + $0x84] sm:$0xf]
        %v208 = vld [vmem:[%s169 + $0x88] sm:$0xf]
        %v209 = vld [vmem:[%s169 + $0x8c] sm:$0xf]
        %v210 = vld [vmem:[%s169 + $0x90] sm:$0xf]
        %v211 = vld [vmem:[%s169 + $0x94] sm:$0xf]
        %v212 = vld [vmem:[%s169 + $0x98] sm:$0xf]
        %v213 = vld [vmem:[%s169 + $0x9c] sm:$0xf]
        %v214 = vld [vmem:[%s169 + $0xa0] sm:$0xf]
        %v215 = vld [vmem:[%s169 + $0xa4] sm:$0xf]
        %v216 = vld [vmem:[%s169 + $0xa8] sm:$0xf]
        %v217 = vld [vmem:[%s169 + $0xac] sm:$0xf]
        %v218 = vld [vmem:[%s169 + $0xb0] sm:$0xf]
        %v219 = vld [vmem:[%s169 + $0xb4] sm:$0xf]
        %v220 = vld [vmem:[%s169 + $0xb8] sm:$0xf]
        %v221 = vld [vmem:[%s169 + $0xbc] sm:$0xf]
        %v222 = vld [vmem:[%s169 + $0xc0] sm:$0xf]
        %v223 = vld [vmem:[%s169 + $0xc4] sm:$0xf]
        %v224 = vld [vmem:[%s169 + $0xc8] sm:$0xf]
        %v225 = vld [vmem:[%s169 + $0xcc] sm:$0xf]
        %v226 = vld [vmem:[%s169 + $0xd0] sm:$0xf]
        %v227 = vld [vmem:[%s169 + $0xd4] sm:$0xf]
        %v228 = vld [vmem:[%s169 + $0xd8] sm:$0xf]
        %v229 = vld [vmem:[%s169 + $0xdc] sm:$0xf]
        %v230 = vld [vmem:[%s169 + $0xe0] sm:$0xf]
        %v231 = vld [vmem:[%s169 + $0xe4] sm:$0xf]
        %v232 = vld [vmem:[%s169 + $0xe8] sm:$0xf]
        %v233 = vld [vmem:[%s169 + $0xec] sm:$0xf]
        %v234 = vld [vmem:[%s169 + $0xf0] sm:$0xf]
        %v235 = vld [vmem:[%s169 + $0xf4] sm:$0xf]
        %v236 = vld [vmem:[%s169 + $0xf8] sm:$0xf]
        %v237 = vld [vmem:[%s169 + $0xfc] sm:$0xf]
        %v302 = vunpack.c.l.b16 %v174
        %v303 = vunpack.c.l.b16 %v175
        %v304 = vunpack.c.l.b16 %v176
        %v305 = vunpack.c.l.b16 %v177
        %v306 = vunpack.c.l.b16 %v178
        %v307 = vunpack.c.l.b16 %v179
        %v308 = vunpack.c.l.b16 %v180
        %v309 = vunpack.c.l.b16 %v181
        %v310 = vunpack.c.l.b16 %v182
        %v311 = vunpack.c.l.b16 %v183
        %v312 = vunpack.c.l.b16 %v184
        %v313 = vunpack.c.l.b16 %v185
        %v314 = vunpack.c.l.b16 %v186
        %v315 = vunpack.c.l.b16 %v187
        %v316 = vunpack.c.l.b16 %v188
        %v317 = vunpack.c.l.b16 %v189
        %v318 = vunpack.c.l.b16 %v190
        %v319 = vunpack.c.l.b16 %v191
        %v320 = vunpack.c.l.b16 %v192
        %v321 = vunpack.c.l.b16 %v193
        %v322 = vunpack.c.l.b16 %v194
        %v323 = vunpack.c.l.b16 %v195
        %v324 = vunpack.c.l.b16 %v196
        %v325 = vunpack.c.l.b16 %v197
        %v326 = vunpack.c.l.b16 %v198
        %v327 = vunpack.c.l.b16 %v199
        %v328 = vunpack.c.l.b16 %v200
        %v329 = vunpack.c.l.b16 %v201
        %v330 = vunpack.c.l.b16 %v202
        %v331 = vunpack.c.l.b16 %v203
        %v332 = vunpack.c.l.b16 %v204
        %v333 = vunpack.c.l.b16 %v205
        %v334 = vunpack.c.l.b16 %v206
        %v335 = vunpack.c.l.b16 %v207
        %v336 = vunpack.c.l.b16 %v208
        %v337 = vunpack.c.l.b16 %v209
        %v338 = vunpack.c.l.b16 %v210
        %v339 = vunpack.c.l.b16 %v211
        %v340 = vunpack.c.l.b16 %v212
        %v341 = vunpack.c.l.b16 %v213
        %v342 = vunpack.c.l.b16 %v214
        %v343 = vunpack.c.l.b16 %v215
        %v344 = vunpack.c.l.b16 %v216
        %v345 = vunpack.c.l.b16 %v217
        %v346 = vunpack.c.l.b16 %v218
        %v347 = vunpack.c.l.b16 %v219
        %v348 = vunpack.c.l.b16 %v220
        %v349 = vunpack.c.l.b16 %v221
        %v350 = vunpack.c.l.b16 %v222
        %v351 = vunpack.c.l.b16 %v223
        %v352 = vunpack.c.l.b16 %v224
        %v353 = vunpack.c.l.b16 %v225
        %v354 = vunpack.c.l.b16 %v226
        %v355 = vunpack.c.l.b16 %v227
        %v356 = vunpack.c.l.b16 %v228
        %v357 = vunpack.c.l.b16 %v229
        %v358 = vunpack.c.l.b16 %v230
        %v359 = vunpack.c.l.b16 %v231
        %v360 = vunpack.c.l.b16 %v232
        %v361 = vunpack.c.l.b16 %v233
        %v362 = vunpack.c.l.b16 %v234
        %v363 = vunpack.c.l.b16 %v235
        %v364 = vunpack.c.l.b16 %v236
        %v365 = vunpack.c.l.b16 %v237
        %v366 = vpack.c.b16 %v303, %v302
        %v367 = vpack.c.b16 %v305, %v304
        %v368 = vpack.c.b16 %v307, %v306
        %v369 = vpack.c.b16 %v309, %v308
        %v370 = vpack.c.b16 %v311, %v310
        %v371 = vpack.c.b16 %v313, %v312
        %v372 = vpack.c.b16 %v315, %v314
        %v373 = vpack.c.b16 %v317, %v316
        %v374 = vpack.c.b16 %v319, %v318
        %v375 = vpack.c.b16 %v321, %v320
        %v376 = vpack.c.b16 %v323, %v322
        %v377 = vpack.c.b16 %v325, %v324
        %v378 = vpack.c.b16 %v327, %v326
        %v379 = vpack.c.b16 %v329, %v328
        %v380 = vpack.c.b16 %v331, %v330
        %v381 = vpack.c.b16 %v333, %v332
        %v382 = vpack.c.b16 %v335, %v334
        %v383 = vpack.c.b16 %v337, %v336
        %v384 = vpack.c.b16 %v339, %v338
        %v385 = vpack.c.b16 %v341, %v340
        %v386 = vpack.c.b16 %v343, %v342
        %v387 = vpack.c.b16 %v345, %v344
        %v388 = vpack.c.b16 %v347, %v346
        %v389 = vpack.c.b16 %v349, %v348
        %v390 = vpack.c.b16 %v351, %v350
        %v391 = vpack.c.b16 %v353, %v352
        %v392 = vpack.c.b16 %v355, %v354
        %v393 = vpack.c.b16 %v357, %v356
        %v394 = vpack.c.b16 %v359, %v358
        %v395 = vpack.c.b16 %v361, %v360
        %v396 = vpack.c.b16 %v363, %v362
        %v397 = vpack.c.b16 %v365, %v364
        %vm398 = vcmask 261120
        %v400 = vsel %vm398, %v173, 0
        %v403 = vsel %vm398, %v366, 0
        %v406 = vsel %vm398, %v367, 0
        %v409 = vsel %vm398, %v368, 0
        %v412 = vsel %vm398, %v369, 0
        %v415 = vsel %vm398, %v370, 0
        %v418 = vsel %vm398, %v371, 0
        %v421 = vsel %vm398, %v372, 0
        %v424 = vsel %vm398, %v373, 0
        %v427 = vsel %vm398, %v374, 0
        %v430 = vsel %vm398, %v375, 0
        %v433 = vsel %vm398, %v376, 0
        %v436 = vsel %vm398, %v377, 0
        %v439 = vsel %vm398, %v378, 0
        %v442 = vsel %vm398, %v379, 0
        %v445 = vsel %vm398, %v380, 0
        %v448 = vsel %vm398, %v381, 0
        %v451 = vsel %vm398, %v382, 0
        %v454 = vsel %vm398, %v383, 0
        %v457 = vsel %vm398, %v384, 0
        %v460 = vsel %vm398, %v385, 0
        %v463 = vsel %vm398, %v386, 0
        %v466 = vsel %vm398, %v387, 0
        %v469 = vsel %vm398, %v388, 0
        %v472 = vsel %vm398, %v389, 0
        %v475 = vsel %vm398, %v390, 0
        %v478 = vsel %vm398, %v391, 0
        %v481 = vsel %vm398, %v392, 0
        %v484 = vsel %vm398, %v393, 0
        %v487 = vsel %vm398, %v394, 0
        %v490 = vsel %vm398, %v395, 0
        %v493 = vsel %vm398, %v396, 0
        %v496 = vsel %vm398, %v397, 0
        %498 = vmatprep.subr.bf16.mxu0 0
        %499 = vmatpush1.bf16.xpose.msra.mxu0 %v403
        %500 = vmatprep.subr.bf16.mxu0 0
        %501 = vmatpush1.bf16.xpose.msra.mxu0 %v406
        %502 = vmatprep.subr.bf16.mxu0 0
        %503 = vmatpush1.bf16.xpose.msra.mxu0 %v409
        %504 = vmatprep.subr.bf16.mxu0 0
        %505 = vmatpush1.bf16.xpose.msra.mxu0 %v412
        %506 = vmatprep.subr.bf16.mxu0 0
        %507 = vmatpush1.bf16.xpose.msra.mxu0 %v415
        %508 = vmatprep.subr.bf16.mxu0 0
        %509 = vmatpush1.bf16.xpose.msra.mxu0 %v418
        %510 = vmatprep.subr.bf16.mxu0 0
        %511 = vmatpush1.bf16.xpose.msra.mxu0 %v421
        %512 = vmatprep.subr.bf16.mxu0 0
        %513 = vmatpush1.bf16.xpose.msra.mxu0 %v424
        %514 = vmatprep.subr.bf16.mxu0 0
        %515 = vmatpush1.bf16.xpose.msra.mxu0 %v427
        %516 = vmatprep.subr.bf16.mxu0 0
        %517 = vmatpush1.bf16.xpose.msra.mxu0 %v430
        %518 = vmatprep.subr.bf16.mxu0 0
        %519 = vmatpush1.bf16.xpose.msra.mxu0 %v433
        %520 = vmatprep.subr.bf16.mxu0 0
        %521 = vmatpush1.bf16.xpose.msra.mxu0 %v436
        %522 = vmatprep.subr.bf16.mxu0 0
        %523 = vmatpush1.bf16.xpose.msra.mxu0 %v439
        %524 = vmatprep.subr.bf16.mxu0 0
        %525 = vmatpush1.bf16.xpose.msra.mxu0 %v442
        %526 = vmatprep.subr.bf16.mxu0 0
        %527 = vmatpush1.bf16.xpose.msra.mxu0 %v445
        %528 = vmatprep.subr.bf16.mxu0 0
        %529 = vmatpush1.bf16.xpose.msra.mxu0 %v448
        %530 = vmatprep.mubr.bf16.mxu0 0
        %531 = vmatmul.mubr.bf16.gmra.mrb[0].mxu0 %v400
        %v532 = vpop.f32.mrb[0].mxu0
        %v533 = vadd.f32 0.0, %v532
        %v534 = vpop.f32.mrb[0].mxu0
        %v535 = vadd.f32 0.0, %v534
        %v536 = vpop.f32.mrb[0].mxu0
        %v537 = vpop.f32.mrb[0].mxu0
        %538 = vdwg.mxu0
        %539 = vmatprep.subr.bf16.mxu0 0
        %540 = vmatpush1.bf16.xpose.msra.mxu0 %v451
        %541 = vmatprep.subr.bf16.mxu0 0
        %542 = vmatpush1.bf16.xpose.msra.mxu0 %v454
        %543 = vmatprep.subr.bf16.mxu0 0
        %544 = vmatpush1.bf16.xpose.msra.mxu0 %v457
        %545 = vmatprep.subr.bf16.mxu0 0
        %546 = vmatpush1.bf16.xpose.msra.mxu0 %v460
        %547 = vmatprep.subr.bf16.mxu0 0
        %548 = vmatpush1.bf16.xpose.msra.mxu0 %v463
        %549 = vmatprep.subr.bf16.mxu0 0
        %550 = vmatpush1.bf16.xpose.msra.mxu0 %v466
        %551 = vmatprep.subr.bf16.mxu0 0
        %552 = vmatpush1.bf16.xpose.msra.mxu0 %v469
        %553 = vmatprep.subr.bf16.mxu0 0
        %554 = vmatpush1.bf16.xpose.msra.mxu0 %v472
        %555 = vmatprep.subr.bf16.mxu0 0
        %556 = vmatpush1.bf16.xpose.msra.mxu0 %v475
        %557 = vmatprep.subr.bf16.mxu0 0
        %558 = vmatpush1.bf16.xpose.msra.mxu0 %v478
        %559 = vmatprep.subr.bf16.mxu0 0
        %560 = vmatpush1.bf16.xpose.msra.mxu0 %v481
        %561 = vmatprep.subr.bf16.mxu0 0
        %562 = vmatpush1.bf16.xpose.msra.mxu0 %v484
        %563 = vmatprep.subr.bf16.mxu0 0
        %564 = vmatpush1.bf16.xpose.msra.mxu0 %v487
        %565 = vmatprep.subr.bf16.mxu0 0
        %566 = vmatpush1.bf16.xpose.msra.mxu0 %v490
        %567 = vmatprep.subr.bf16.mxu0 0
        %568 = vmatpush1.bf16.xpose.msra.mxu0 %v493
        %569 = vmatprep.subr.bf16.mxu0 0
        %570 = vmatpush1.bf16.xpose.msra.mxu0 %v496
        %571 = vmatprep.mubr.bf16.mxu0 0
        %572 = vmatmul.mubr.bf16.gmra.mrb[0].mxu0 %v400
        %v573 = vpop.f32.mrb[0].mxu0
        %v574 = vadd.f32 0.0, %v573
        %v575 = vpop.f32.mrb[0].mxu0
        %v576 = vadd.f32 0.0, %v575
        %v577 = vpop.f32.mrb[0].mxu0
        %v578 = vpop.f32.mrb[0].mxu0
        %579 = vdwg.mxu0
        %v580 = vld [vmem:[%s2] sm:$0xff]
        %582 = vset.pattern.permute.xlu0 0
        %583 = vperm.xlu0 %582, %v580
        %v584 = vpop.permute.xlu0 %583
        %v586 = vsub.f32 %v533, %v584
        %v587 = vsub.f32 %v535, %v584
        %v588 = vsub.f32 %v574, %v584
        %v589 = vsub.f32 %v576, %v584
        %v590 = vrot.slane %v586, 4
        %v591 = vmax.f32 %v586, %v590
        %v592 = vrot.slane %v591, 2
        %v593 = vmax.f32 %v591, %v592
        %v594 = vrot.slane %v593, 1
        %v595 = vmax.f32 %v593, %v594
        %v596 = vrot.slane %v587, 4
        %v597 = vmax.f32 %v587, %v596
        %v598 = vrot.slane %v597, 2
        %v599 = vmax.f32 %v597, %v598
        %v600 = vrot.slane %v599, 1
        %v601 = vmax.f32 %v599, %v600
        %v602 = vrot.slane %v588, 4
        %v603 = vmax.f32 %v588, %v602
        %v604 = vrot.slane %v603, 2
        %v605 = vmax.f32 %v603, %v604
        %v606 = vrot.slane %v605, 1
        %v607 = vmax.f32 %v605, %v606
        %v608 = vrot.slane %v589, 4
        %v609 = vmax.f32 %v589, %v608
        %v610 = vrot.slane %v609, 2
        %v611 = vmax.f32 %v609, %v610
        %v612 = vrot.slane %v611, 1
        %v613 = vmax.f32 %v611, %v612
        %v614 = vlaneseq
        %v615 = vshrl.u32 %v614, 7
        %vm616 = vcmp.ge.f32.partialorder %v586, %v595
        %vm617 = vcmp.ge.f32.partialorder %v587, %v601
        %vm618 = vcmp.ge.f32.partialorder %v588, %v607
        %vm619 = vcmp.ge.f32.partialorder %v589, %v613
        %v620 = vsel %vm616, %v615, 8
        %v621 = vsel %vm617, %v615, 8
        %v622 = vsel %vm618, %v615, 8
        %v623 = vsel %vm619, %v615, 8
        %v624 = vrot.slane %v620, 4
        %vm625 = vcmp.lt.s32.totalorder %v620, %v624
        %v626 = vsel %vm625, %v620, %v624
        %v627 = vrot.slane %v626, 2
        %vm628 = vcmp.lt.s32.totalorder %v626, %v627
        %v629 = vsel %vm628, %v626, %v627
        %v630 = vrot.slane %v629, 1
        %vm631 = vcmp.lt.s32.totalorder %v629, %v630
        %v632 = vsel %vm631, %v629, %v630
        %v633 = vrot.slane %v621, 4
        %vm634 = vcmp.lt.s32.totalorder %v621, %v633
        %v635 = vsel %vm634, %v621, %v633
        %v636 = vrot.slane %v635, 2
        %vm637 = vcmp.lt.s32.totalorder %v635, %v636
        %v638 = vsel %vm637, %v635, %v636
        %v639 = vrot.slane %v638, 1
        %vm640 = vcmp.lt.s32.totalorder %v638, %v639
        %v641 = vsel %vm640, %v638, %v639
        %v642 = vrot.slane %v622, 4
        %vm643 = vcmp.lt.s32.totalorder %v622, %v642
        %v644 = vsel %vm643, %v622, %v642
        %v645 = vrot.slane %v644, 2
        %vm646 = vcmp.lt.s32.totalorder %v644, %v645
        %v647 = vsel %vm646, %v644, %v645
        %v648 = vrot.slane %v647, 1
        %vm649 = vcmp.lt.s32.totalorder %v647, %v648
        %v650 = vsel %vm649, %v647, %v648
        %v651 = vrot.slane %v623, 4
        %vm652 = vcmp.lt.s32.totalorder %v623, %v651
        %v653 = vsel %vm652, %v623, %v651
        %v654 = vrot.slane %v653, 2
        %vm655 = vcmp.lt.s32.totalorder %v653, %v654
        %v656 = vsel %vm655, %v653, %v654
        %v657 = vrot.slane %v656, 1
        %vm658 = vcmp.lt.s32.totalorder %v656, %v657
        %v659 = vsel %vm658, %v656, %v657
        %v660 = vcombine.low %v632, %v641
        %v661 = vcombine.low %v650, %v659
        %v663 = vunpack.c.l.s4 1966171168
        %v664 = vunpack.c.0.s8 %v663
        %v665 = vlaneseq
        %v666 = vshrl.u32 %v665, 7
        %v667 = vsub.s32 %v664, %v666
        %v668 = vrot.slane %v660, %v667
        %v670 = vunpack.c.l.s4 1966171168
        %v671 = vunpack.c.0.s8 %v670
        %v672 = vlaneseq
        %v673 = vshrl.u32 %v672, 7
        %v674 = vsub.s32 %v671, %v673
        %v675 = vrot.slane %v661, %v674
        %v676 = vcombine.low %v668, %v675
        %v678 = vunpack.c.l.s4 1966171168
        %v679 = vunpack.c.0.s8 %v678
        %v680 = vlaneseq
        %v681 = vshrl.u32 %v680, 7
        %v682 = vsub.s32 %v679, %v681
        %v683 = vrot.slane %v676, %v682
        %v684 = vlaneseq
        %vm685 = vcmp.ge.s32.totalorder %v684, 0
        %vm686 = vcmp.lt.s32.totalorder %v684, 512
        %vm687 = vmand %vm685, %vm686
        %688 = vst.msk [vmem:[%s164] sm:$0xf] %vm687, %v683
        %s689 = sand.u32 %s93, 1
        %s690 = scalar_lea.sflag [#allocation3], %s689
        %s691 = sand.u32 %s93, 1
        %s692 = smul.addr %s691, 4
        %s693 = scalar_lea.vmem [#allocation2], %s692
        // Predicated region
        $region33: #{tpu_custom_call.1} parent=31 // pred_check
          %p694 = pneg %p103
        $region34: #{tpu_custom_call.1} parent=31 // pred_check_branch
          %696 = sbr.rel (%p694) target = $region36
        $region35: #{tpu_custom_call.1} parent=31 // pred_region
          %s697 = smul.u32 4, %s17
          %s699 = ssub.s32 64, 64
          %700 = vsyncadd %s690, %s699
          %s701 = smul.addr %s697, 16
          %s702 = scalar_lea.hbm %s3, %s701
          %s704 = sshll.u32 %s693, 4
          %s705 = int_to_ptr.vmem [resolvable:$true] %s704
          %707 = dma.vmem_to_hbm [thread:$0]  %s705, 64, %s702, %s690
        $region36: #{tpu_custom_call.1} parent=31 // pred_fallthru
          _
      $region32: #{tpu_custom_call.1} parent=5 // pred_fallthru
        _
      %p708 = scmp.le.s32.totalorder 2, %s12
      // Predicated region
      $region37: #{tpu_custom_call.1} parent=5 // pred_check
        %p709 = pneg %p708
      $region38: #{tpu_custom_call.1} parent=5 // pred_check_branch
        %711 = sbr.rel (%p709) target = $region40
      $region39: #{tpu_custom_call.1} parent=5 // pred_region
        %s712 = ssub.s32 %s12, 2
        // Predicated region
        $region41: #{tpu_custom_call.1} parent=39 // pred_check
          %p713 = pneg %p109
        $region42: #{tpu_custom_call.1} parent=39 // pred_check_branch
          %715 = sbr.rel (%p713) target = $region44
        $region43: #{tpu_custom_call.1} parent=39 // pred_region
          %s716 = sand.u32 %s94, 1
          %s717 = scalar_lea.sflag [#allocation3], %s716
          %s718 = sand.u32 %s94, 1
          %s719 = smul.addr %s718, 4
          %s720 = scalar_lea.vmem [#allocation2], %s719
          %721 = dma.done %s717, 64
        $region44: #{tpu_custom_call.1} parent=39 // pred_fallthru
          _
      $region40: #{tpu_custom_call.1} parent=5 // pred_fallthru
        _
    $region6: #{tpu_custom_call.1} parent=1 // loop_footer
      %s16 = sadd.s32 1, %s12
    $region7: #{tpu_custom_call.1} parent=1 // loop_footer_branch
      %11 = sbr.rel target = $region3
    $region8: #{tpu_custom_call.1} parent=1 // loop_exit
      _
    %722 = vsyncpa [#allocation3], 1
    %s723 = scalar_lea.sflag [#allocation3], 1
    %724 = vsyncpa %s723, 1

</llo_original>
